<compile_context>
chip_gen: v7x
topology: tpu7x:2x2x1
jax: 0.10.0
libtpu: 0.0.40
codegen_flags: <defaults>
</compile_context>

<pallas_src>
import math
import functools

import jax
import jax.numpy as jnp
import numpy as np
from jax import lax
from jax.experimental import pallas as pl
from jax.experimental.pallas import tpu as pltpu


# ----------------------------- kernel helpers --------------------------------

def _layernorm(h, g, b, eps=1e-5):
    # One-pass variance: mean(x*x) - mu*mu (saves a full elementwise pass).
    mu = jnp.mean(h, axis=-1, keepdims=True)
    var = jnp.mean(h * h, axis=-1, keepdims=True) - mu * mu
    return (h - mu) * lax.rsqrt(var + eps) * g + b


def _gelu_tanh(x):
    # GELU(approximate='tanh'), matches PyTorch.
    c = math.sqrt(2.0 / math.pi)
    return 0.5 * x * (1.0 + jnp.tanh(c * (x + 0.044715 * x * x * x)))


def _pick_tile(T):
    # 256-aligned tiles feed the 2x256 MXU (v6e/v7x); 128 for v5e-friendly
    # shapes; otherwise keep the sequence fully resident (small-T fallback).
    for t in (256, 128):
        if T % t == 0:
            return t
    return T


# ----------------------- pass 1: LN1 + fused QKV projection -------------------

def qkv_kernel(n_head,
               x_ref,                      # (tt, C) f32
               ln1_g_ref, ln1_b_ref,       # (1, C) f32
               w_qkv_ref, b_qkv_ref,       # (C, 3C) bf16, (1, 3C) f32
               q_out_ref,                  # (tt, C) bf16, pre-scaled
               kv_out_ref):                # (tt, 2C) bf16
    x = x_ref[...]
    C = x.shape[-1]
    hd = C // n_head
    scale = 1.0 / math.sqrt(hd)

    h = _layernorm(x, ln1_g_ref[...], ln1_b_ref[...])
    # Single full-width, lane-dense MXU matmul (N = 3C).
    qkv = jnp.dot(h.astype(jnp.bfloat16), w_qkv_ref[...],
                  preferred_element_type=jnp.float32) + b_qkv_ref[...]
    q_out_ref[...] = (qkv[:, 0:C] * scale).astype(jnp.bfloat16)
    kv_out_ref[...] = qkv[:, C:3 * C].astype(jnp.bfloat16)


# --------- pass 2: causal attention + out-proj + residual + LN2 + MLP ---------

def attn_mlp_kernel(n_head,
                    x_ref,                      # (tq, C) f32  residual tile
                    q_ref,                      # (tq, C) bf16 scaled queries
                    kv_ref,                     # (T, 2C) bf16 full-seq K|V
                    w_aproj_ref, b_aproj_ref,   # (C, C) bf16, (1, C) f32
                    ln2_g_ref, ln2_b_ref,       # (1, C) f32
                    w_fc_ref, b_fc_ref,         # (C, 4C) bf16, (1, 4C) f32
                    w_mproj_ref, b_mproj_ref,   # (4C, C) bf16, (1, C) f32
                    out_ref,                    # (tq, C) f32
                    y_scr):                     # (tq, C) f32 scratch
    qi = pl.program_id(1)
    x = x_ref[...]
    tq, C = x.shape
    hd = C // n_head

    q = q_ref[...]                              # (tq, C) bf16
    kv = kv_ref[...]                            # (T, 2C) bf16
    k = kv[:, 0:C]                              # (T, C)
    v = kv[:, C:2 * C]                          # (T, C)
    T = k.shape[0]

    # 2-D causal mask with global row indices for this q-tile (f32-only path).
    row = qi * tq + lax.broadcasted_iota(jnp.int32, (tq, T), 0)
    col = lax.broadcasted_iota(jnp.int32, (tq, T), 1)
    causal = col <= row

    # Per-head scores / PV (small-K matmuls are intrinsic here); softmax stays
    # f32; normalisation happens after PV on the (tq, hd) result.
    for h in range(n_head):
        lo, hi = h * hd, (h + 1) * hd
        qh = q[:, lo:hi]                        # (tq, hd) bf16 (pre-scaled)
        kh = k[:, lo:hi]                        # (T, hd)  bf16
        vh = v[:, lo:hi]                        # (T, hd)  bf16
        s = lax.dot_general(qh, kh, (((1,), (1,)), ((), ())),
                            preferred_element_type=jnp.float32)   # (tq, T)
        s = jnp.where(causal, s, -1e30)
        m = jnp.max(s, axis=-1, keepdims=True)
        p = jnp.exp(s - m)
        l = jnp.sum(p, axis=-1, keepdims=True)
        yh = jnp.dot(p.astype(jnp.bfloat16), vh,
                     preferred_element_type=jnp.float32)          # (tq, hd)
        # Normalise after PV (f32, 1/T the work of normalising p); EUP recip.
        y_scr[:, lo:hi] = yh * pl.reciprocal(l, approx=True)

    # Single fused output projection (K = C), then residual 1.
    y = jnp.dot(y_scr[...].astype(jnp.bfloat16), w_aproj_ref[...],
                preferred_element_type=jnp.float32) + b_aproj_ref[...]
    x1 = x + y

    # MLP branch, tiled along T via the q-tile grid axis.
    h2 = _layernorm(x1, ln2_g_ref[...], ln2_b_ref[...]).astype(jnp.bfloat16)
    ff = jnp.dot(h2, w_fc_ref[...],
                 preferred_element_type=jnp.float32) + b_fc_ref[...]   # (tq,4C)
    ff = _gelu_tanh(ff)
    ff = jnp.dot(ff.astype(jnp.bfloat16), w_mproj_ref[...],
                 preferred_element_type=jnp.float32) + b_mproj_ref[...]
    out_ref[...] = x1 + ff                                             # res 2


# ------------------------------- wrapper --------------------------------------

def block_forward(x, params, n_head):
    """x: (B, T, C) float32. params: dict of weights (see init_params)."""
    B, T, C = x.shape
    tt = _pick_tile(T)
    n_t = T // tt
    bf16 = jnp.bfloat16

    def wspec(shape):
        nd = len(shape)
        return pl.BlockSpec(shape, lambda b, i, nd=nd: (0,) * nd)

    cparams = pltpu.CompilerParams(
        dimension_semantics=("parallel", "parallel"),
        vmem_limit_bytes=32 * 1024 * 1024,
    )

    # ---- pass 1: LN1 + fused QKV projection --------------------------------
    q_bf, kv_bf = pl.pallas_call(
        functools.partial(qkv_kernel, n_head),
        out_shape=(jax.ShapeDtypeStruct((B, T, C), bf16),
                   jax.ShapeDtypeStruct((B, T, 2 * C), bf16)),
        grid_spec=pltpu.PrefetchScalarGridSpec(
            num_scalar_prefetch=0,
            grid=(B, n_t),
            in_specs=[
                pl.BlockSpec((None, tt, C), lambda b, i: (b, i, 0)),
                wspec(params["ln1_g"].shape),
                wspec(params["ln1_b"].shape),
                wspec(params["w_attn"].shape),
                wspec(params["b_attn"].shape),
            ],
            out_specs=[
                pl.BlockSpec((None, tt, C), lambda b, i: (b, i, 0)),
                pl.BlockSpec((None, tt, 2 * C), lambda b, i: (b, i, 0)),
            ],
        ),
        compiler_params=cparams,
    )(x, params["ln1_g"], params["ln1_b"], params["w_attn"], params["b_attn"])

    # ---- pass 2: attention + out-proj + residual + LN2 + MLP + residual -----
    out = pl.pallas_call(
        functools.partial(attn_mlp_kernel, n_head),
        out_shape=jax.ShapeDtypeStruct((B, T, C), jnp.float32),
        grid_spec=pltpu.PrefetchScalarGridSpec(
            num_scalar_prefetch=0,
            grid=(B, n_t),
            in_specs=[
                pl.BlockSpec((None, tt, C), lambda b, i: (b, i, 0)),      # x tile
                pl.BlockSpec((None, tt, C), lambda b, i: (b, i, 0)),      # q tile
                pl.BlockSpec((None, T, 2 * C), lambda b, i: (b, 0, 0)),   # K|V full
                wspec(params["w_aproj"].shape),
                wspec(params["b_aproj"].shape),
                wspec(params["ln2_g"].shape),
                wspec(params["ln2_b"].shape),
                wspec(params["w_fc"].shape),
                wspec(params["b_fc"].shape),
                wspec(params["w_mproj"].shape),
                wspec(params["b_mproj"].shape),
            ],
            out_specs=pl.BlockSpec((None, tt, C), lambda b, i: (b, i, 0)),
            scratch_shapes=[pltpu.VMEM((tt, C), jnp.float32)],
        ),
        compiler_params=cparams,
    )(x, q_bf, kv_bf,
      params["w_aproj"], params["b_aproj"],
      params["ln2_g"], params["ln2_b"],
      params["w_fc"], params["b_fc"],
      params["w_mproj"], params["b_mproj"])
    return out


# --------------------------- parameter init -----------------------------------

def init_params(key, n_embd):
    C = n_embd
    ks = jax.random.split(key, 4)
    std = 0.02
    f32, bf16 = jnp.float32, jnp.bfloat16
    # Linear weights stored (in, out) in bf16 (MXU operand dtype); biases/LN f32.
    return {
        "ln1_g": jnp.ones((1, C), f32),
        "ln1_b": jnp.zeros((1, C), f32),
        "w_attn": (std * jax.random.normal(ks[0], (C, 3 * C), f32)).astype(bf16),
        "b_attn": jnp.zeros((1, 3 * C), f32),
        "w_aproj": (std * jax.random.normal(ks[1], (C, C), f32)).astype(bf16),
        "b_aproj": jnp.zeros((1, C), f32),
        "ln2_g": jnp.ones((1, C), f32),
        "ln2_b": jnp.zeros((1, C), f32),
        "w_fc": (std * jax.random.normal(ks[2], (C, 4 * C), f32)).astype(bf16),
        "b_fc": jnp.zeros((1, 4 * C), f32),
        "w_mproj": (std * jax.random.normal(ks[3], (4 * C, C), f32)).astype(bf16),
        "b_mproj": jnp.zeros((1, C), f32),
    }


# --------------------------- pure-JAX reference --------------------------------

def block_reference(x, p, n_head):
    B, T, C = x.shape
    hd = C // n_head

    def ln(h, g, b):
        mu = h.mean(-1, keepdims=True)
        var = ((h - mu) ** 2).mean(-1, keepdims=True)
        return (h - mu) / jnp.sqrt(var + 1e-5) * g + b

    h = ln(x, p["ln1_g"], p["ln1_b"])
    qkv = h @ p["w_attn"] + p["b_attn"]
    q, k, v = jnp.split(qkv, 3, axis=-1)
    q = q.reshape(B, T, n_head, hd).transpose(0, 2, 1, 3)
    k = k.reshape(B, T, n_head, hd).transpose(0, 2, 1, 3)
    v = v.reshape(B, T, n_head, hd).transpose(0, 2, 1, 3)
    s = jnp.einsum("bhqd,bhkd->bhqk", q, k) / math.sqrt(hd)
    mask = jnp.tril(jnp.ones((T, T), bool))
    s = jnp.where(mask, s, -jnp.inf)
    a = jax.nn.softmax(s, axis=-1)
    y = jnp.einsum("bhqk,bhkd->bhqd", a, v).transpose(0, 2, 1, 3).reshape(B, T, C)
    y = y @ p["w_aproj"] + p["b_aproj"]
    x = x + y
    h2 = ln(x, p["ln2_g"], p["ln2_b"])
    ff = h2 @ p["w_fc"] + p["b_fc"]
    ff = 0.5 * ff * (1.0 + jnp.tanh(math.sqrt(2.0 / math.pi)
                                    * (ff + 0.044715 * ff ** 3)))
    ff = ff @ p["w_mproj"] + p["b_mproj"]
    return x + ff


# ----------------------------------- main --------------------------------------

if __name__ == "__main__":
    B, T, n_embd, n_head = 2, 8, 32, 4
    key = jax.random.PRNGKey(0)
    kx, kp = jax.random.split(key)
    x = jax.random.normal(kx, (B, T, n_embd), jnp.float32)
    params = init_params(kp, n_embd)

    out = jax.block_until_ready(block_forward(x, params, n_head))
    ref = jax.block_until_ready(block_reference(x, params, n_head))

    # bf16 matmul operands + approx reciprocal => looser tolerance than pure f32.
    np.testing.assert_allclose(np.asarray(out), np.asarray(ref),
                               rtol=2e-2, atol=2e-2)
    print("KERNEL_OK")
</pallas_src>

<mosaic_0001>
module attributes {stable_mosaic.version = 11 : i64} {
  func.func @qkv_kernel(%arg0: i32, %arg1: i32, %arg2: memref<1x8x32xf32, #tpu.memory_space<vmem>>, %arg3: memref<1x32xf32, #tpu.memory_space<vmem>>, %arg4: memref<1x32xf32, #tpu.memory_space<vmem>>, %arg5: memref<32x96xbf16, #tpu.memory_space<vmem>>, %arg6: memref<1x96xf32, #tpu.memory_space<vmem>>, %arg7: memref<1x8x32xbf16, #tpu.memory_space<vmem>>, %arg8: memref<1x8x64xbf16, #tpu.memory_space<vmem>>) attributes {dimension_semantics = [#tpu.dimension_semantics<parallel>, #tpu.dimension_semantics<parallel>], iteration_bounds = array<i64: 2, 1>, scalar_prefetch = 0 : i64, scratch_operands = 0 : i64, tpu.core_type = #tpu.core_type<tc>, window_params = [{transform_indices = @transform_0, window_bounds = array<i64: 1, 8, 32>}, {pipeline_mode = #tpu.pipeline_mode<synchronous>, transform_indices = @transform_1, window_bounds = array<i64: 1, 32>}, {pipeline_mode = #tpu.pipeline_mode<synchronous>, transform_indices = @transform_2, window_bounds = array<i64: 1, 32>}, {pipeline_mode = #tpu.pipeline_mode<synchronous>, transform_indices = @transform_3, window_bounds = array<i64: 32, 96>}, {pipeline_mode = #tpu.pipeline_mode<synchronous>, transform_indices = @transform_4, window_bounds = array<i64: 1, 96>}, {transform_indices = @transform_5, window_bounds = array<i64: 1, 8, 32>}, {transform_indices = @transform_6, window_bounds = array<i64: 1, 8, 64>}]} {
    %c0 = arith.constant 0 : index
    %c0_0 = arith.constant 0 : index
    %c0_1 = arith.constant 0 : index
    %0 = vector.load %arg2[%c0, %c0_0, %c0_1] : memref<1x8x32xf32, #tpu.memory_space<vmem>>, vector<1x8x32xf32>
    %1 = vector.shape_cast %0 : vector<1x8x32xf32> to vector<8x32xf32>
    %c0_2 = arith.constant 0 : index
    %c0_3 = arith.constant 0 : index
    %2 = vector.load %arg3[%c0_2, %c0_3] : memref<1x32xf32, #tpu.memory_space<vmem>>, vector<1x32xf32>
    %c0_4 = arith.constant 0 : index
    %c0_5 = arith.constant 0 : index
    %3 = vector.load %arg4[%c0_4, %c0_5] : memref<1x32xf32, #tpu.memory_space<vmem>>, vector<1x32xf32>
    %cst = arith.constant dense<0.000000e+00> : vector<8xf32>
    %4 = vector.multi_reduction <add>, %1, %cst [1] : vector<8x32xf32> to vector<8xf32>
    %5 = vector.shape_cast %4 : vector<8xf32> to vector<8x1xf32>
    %cst_6 = arith.constant 3.200000e+01 : f32
    %6 = vector.broadcast %cst_6 : f32 to vector<8x1xf32>
    %7 = arith.divf %5, %6 : vector<8x1xf32>
    %8 = arith.mulf %1, %1 : vector<8x32xf32>
    %cst_7 = arith.constant dense<0.000000e+00> : vector<8xf32>
    %9 = vector.multi_reduction <add>, %8, %cst_7 [1] : vector<8x32xf32> to vector<8xf32>
    %10 = vector.shape_cast %9 : vector<8xf32> to vector<8x1xf32>
    %cst_8 = arith.constant 3.200000e+01 : f32
    %11 = vector.broadcast %cst_8 : f32 to vector<8x1xf32>
    %12 = arith.divf %10, %11 : vector<8x1xf32>
    %13 = arith.mulf %7, %7 : vector<8x1xf32>
    %14 = arith.subf %12, %13 : vector<8x1xf32>
    %15 = vector.broadcast %7 : vector<8x1xf32> to vector<8x32xf32>
    %16 = arith.subf %1, %15 : vector<8x32xf32>
    %cst_9 = arith.constant 9.99999974E-6 : f32
    %17 = vector.broadcast %cst_9 : f32 to vector<8x1xf32>
    %18 = arith.addf %14, %17 : vector<8x1xf32>
    %19 = math.rsqrt %18 : vector<8x1xf32>
    %20 = vector.broadcast %19 : vector<8x1xf32> to vector<8x32xf32>
    %21 = arith.mulf %16, %20 : vector<8x32xf32>
    %22 = vector.broadcast %2 : vector<1x32xf32> to vector<8x32xf32>
    %23 = arith.mulf %21, %22 : vector<8x32xf32>
    %24 = vector.broadcast %3 : vector<1x32xf32> to vector<8x32xf32>
    %25 = arith.addf %23, %24 : vector<8x32xf32>
    %26 = arith.truncf %25 : vector<8x32xf32> to vector<8x32xbf16>
    %c0_10 = arith.constant 0 : index
    %c0_11 = arith.constant 0 : index
    %27 = vector.load %arg5[%c0_10, %c0_11] : memref<32x96xbf16, #tpu.memory_space<vmem>>, vector<32x96xbf16>
    %cst_12 = arith.constant dense<0.000000e+00> : vector<8x96xf32>
    %28 = tpu.matmul %26, %27, %cst_12 {dimension_numbers = #tpu.dot_dimension_numbers<[1], [0], [0], [1], [0, 0, 1, 1], [], []>} : vector<8x32xbf16>, vector<32x96xbf16>, vector<8x96xf32> -> vector<8x96xf32>
    %c0_13 = arith.constant 0 : index
    %c0_14 = arith.constant 0 : index
    %29 = vector.load %arg6[%c0_13, %c0_14] : memref<1x96xf32, #tpu.memory_space<vmem>>, vector<1x96xf32>
    %30 = vector.broadcast %29 : vector<1x96xf32> to vector<8x96xf32>
    %31 = arith.addf %28, %30 : vector<8x96xf32>
    %32 = vector.extract_strided_slice %31 {offsets = [0, 0], sizes = [8, 32], strides = [1, 1]} : vector<8x96xf32> to vector<8x32xf32>
    %cst_15 = arith.constant 0.353553385 : f32
    %33 = vector.broadcast %cst_15 : f32 to vector<8x32xf32>
    %34 = arith.mulf %32, %33 : vector<8x32xf32>
    %35 = arith.truncf %34 : vector<8x32xf32> to vector<8x32xbf16>
    %c0_16 = arith.constant 0 : index
    %c0_17 = arith.constant 0 : index
    %c0_18 = arith.constant 0 : index
    %36 = vector.load %arg7[%c0_16, %c0_17, %c0_18] : memref<1x8x32xbf16, #tpu.memory_space<vmem>>, vector<1x8x32xbf16>
    %37 = vector.shape_cast %36 : vector<1x8x32xbf16> to vector<8x32xbf16>
    %38 = vector.shape_cast %35 : vector<8x32xbf16> to vector<1x8x32xbf16>
    tpu.vector_store %arg7[%c0_16, %c0_17, %c0_18], %38 {strides = array<i32>} : memref<1x8x32xbf16, #tpu.memory_space<vmem>>, vector<1x8x32xbf16>,
    %39 = vector.extract_strided_slice %31 {offsets = [0, 32], sizes = [8, 64], strides = [1, 1]} : vector<8x96xf32> to vector<8x64xf32>
    %40 = arith.truncf %39 : vector<8x64xf32> to vector<8x64xbf16>
    %c0_19 = arith.constant 0 : index
    %c0_20 = arith.constant 0 : index
    %c0_21 = arith.constant 0 : index
    %41 = vector.load %arg8[%c0_19, %c0_20, %c0_21] : memref<1x8x64xbf16, #tpu.memory_space<vmem>>, vector<1x8x64xbf16>
    %42 = vector.shape_cast %41 : vector<1x8x64xbf16> to vector<8x64xbf16>
    %43 = vector.shape_cast %40 : vector<8x64xbf16> to vector<1x8x64xbf16>
    tpu.vector_store %arg8[%c0_19, %c0_20, %c0_21], %43 {strides = array<i32>} : memref<1x8x64xbf16, #tpu.memory_space<vmem>>, vector<1x8x64xbf16>,
    return
  }
  func.func @transform_0(%arg0: i32, %arg1: i32) -> (i32, i32, i32) {
    %c0_i32 = arith.constant 0 : i32
    %c0_i32_0 = arith.constant 0 : i32
    return %arg0, %arg1, %c0_i32 : i32, i32, i32
  }
  func.func @transform_1(%arg0: i32, %arg1: i32) -> (i32, i32) {
    %c0_i32 = arith.constant 0 : i32
    %c0_i32_0 = arith.constant 0 : i32
    %c0_i32_1 = arith.constant 0 : i32
    return %c0_i32, %c0_i32_0 : i32, i32
  }
  func.func @transform_2(%arg0: i32, %arg1: i32) -> (i32, i32) {
    %c0_i32 = arith.constant 0 : i32
    %c0_i32_0 = arith.constant 0 : i32
    %c0_i32_1 = arith.constant 0 : i32
    return %c0_i32, %c0_i32_0 : i32, i32
  }
  func.func @transform_3(%arg0: i32, %arg1: i32) -> (i32, i32) {
    %c0_i32 = arith.constant 0 : i32
    %c0_i32_0 = arith.constant 0 : i32
    %c0_i32_1 = arith.constant 0 : i32
    return %c0_i32, %c0_i32_0 : i32, i32
  }
  func.func @transform_4(%arg0: i32, %arg1: i32) -> (i32, i32) {
    %c0_i32 = arith.constant 0 : i32
    %c0_i32_0 = arith.constant 0 : i32
    %c0_i32_1 = arith.constant 0 : i32
    return %c0_i32, %c0_i32_0 : i32, i32
  }
  func.func @transform_5(%arg0: i32, %arg1: i32) -> (i32, i32, i32) {
    %c0_i32 = arith.constant 0 : i32
    %c0_i32_0 = arith.constant 0 : i32
    return %arg0, %arg1, %c0_i32 : i32, i32, i32
  }
  func.func @transform_6(%arg0: i32, %arg1: i32) -> (i32, i32, i32) {
    %c0_i32 = arith.constant 0 : i32
    %c0_i32_0 = arith.constant 0 : i32
    return %arg0, %arg1, %c0_i32 : i32, i32, i32
  }
}

</mosaic_0001>

<llo_original>
// kernel: tpu_custom_call.1
$region0: #{tpu_custom_call.1}
  #allocation0 [shape = 'u32[]', space=smem, size = 0x4, offset = 0x4, fixed_abs, tag = 'smem constant byte address 0x4 - core index']
  #allocation1 [shape = 'u32[144,128]{1,0:T(1,128)}', space=vmem, size = 0x12000, scoped, tag = 'internal scratch']
  %s0 = inlined_call_operand.hbm [shape: f32[2,8,32], index: 0, kind: input, shape index: {}]
  %s1 = inlined_call_operand.vmem [shape: f32[1,32], index: 1, kind: input, shape index: {}]
  %s2 = inlined_call_operand.vmem [shape: f32[1,32], index: 2, kind: input, shape index: {}]
  %s3 = inlined_call_operand.hbm [shape: bf16[32,96], index: 3, kind: input, shape index: {}]
  %s4 = inlined_call_operand.vmem [shape: f32[1,96], index: 4, kind: input, shape index: {}]
  %s5 = inlined_call_operand.hbm [shape: bf16[2,8,32], index: 5, kind: output, shape index: {0}]
  %s6 = inlined_call_operand.hbm [shape: bf16[2,8,64], index: 6, kind: output, shape index: {1}]
  %7 = xla_tuple %s5, %s6
  %s8 = sld [smem:[#allocation0]]
  $region69: #{tpu_custom_call.1} parent=0
    _
  %s10 = ssub.s32 1, %s8
  %s11 = scalar_select 0, %s10, %s8
  $region1: #{tpu_custom_call.1} parent=0
    #allocation2 [shape = 'u8[8192]{0}', space=vmem, size = 0x2000, scoped, tag = 'input window, operand 0']
    #allocation3 [shape = 's32[2]{0}', space=sflag, size = 0x8, scoped, tag = 'scoped memory for tpu_custom_call.1']
    #allocation4 [shape = 's32[2]{0}', space=sflag, size = 0x8, scoped, tag = 'scoped memory for tpu_custom_call.1']
    #allocation5 [shape = 'u8[8192]{0}', space=vmem, size = 0x2000, scoped, tag = 'input window, operand 3, single buffered']
    #allocation6 [shape = 's32[1]{0}', space=sflag, size = 0x4, scoped, tag = 'scoped memory for tpu_custom_call.1']
    #allocation7 [shape = 'u8[4096]{0}', space=vmem, size = 0x1000, scoped, tag = 'output window, operand 0']
    #allocation8 [shape = 'u8[4096]{0}', space=vmem, size = 0x1000, scoped, tag = 'output window, operand 1']
    #allocation9 [shape = 's32[2]{0}', space=sflag, size = 0x8, scoped, tag = 'scoped memory for tpu_custom_call.1']
    %12 = vsyncpa [#allocation3], 0
    %s13 = scalar_lea.sflag [#allocation3], 1
    %14 = vsyncpa %s13, 0
    %15 = vsyncpa [#allocation6], 0
    %16 = vsyncpa [#allocation4], 0
    %s17 = scalar_lea.sflag [#allocation4], 1
    %18 = vsyncpa %s17, 0
    %19 = vsyncpa [#allocation9], 0
    %s20 = scalar_lea.sflag [#allocation9], 1
    %21 = vsyncpa %s20, 0
    loop: start=0, step=1, limit=4
    $region2: #{tpu_custom_call.1} parent=1 // loop_pre_header
      _
    $region3: #{tpu_custom_call.1} parent=1 // loop_header
      %s23 = sphi 0, %s27
      %p24 = scmp.ge.s32.totalorder %s23, 4
      %s30 = sphi 0, %s42
      %s31 = sphi 0, %s38
      %s32 = sphi 0, %s30
      %s33 = sphi 0, %s31
      %s34 = sphi 0, %s32
      %s35 = sphi 0, %s33
      %s47 = sphi 0, %s49
      %s50 = sphi 0, %s47
      %s51 = sphi 0, %s50
      %s67 = sphi 0, %s51
      %s71 = sphi 0, %s71
      %s73 = sphi 0, %s71
      %s74 = sphi 0, %s73
      %s88 = sphi 0, %s74
      %s92 = sphi 0, %s92
      %s94 = sphi 0, %s92
      %s95 = sphi 0, %s94
      %s109 = sphi 0, %s95
      %s113 = sphi 0, %s113
      %s115 = sphi 0, %s113
      %s116 = sphi 0, %s115
      %s130 = sphi 0, %s116
      %s134 = sphi 0, %s134
      %s136 = sphi 0, %s134
      %s137 = sphi 0, %s136
      %s151 = sphi 0, %s137
      %s159 = sphi 0, %s161
      %s162 = sphi 0, %s159
      %s163 = sphi 0, %s162
      %s179 = sphi 0, %s163
      %s187 = sphi 0, %s189
      %s190 = sphi 0, %s187
      %s191 = sphi 0, %s190
      %s207 = sphi 0, %s191
    $region4: #{tpu_custom_call.1} parent=1 // loop_header_branch
      %26 = sbr.rel (%p24) target = $region8
    $region5: #{tpu_custom_call.1} parent=1 // loop_body
      %s28 = ssub.s32 %s23, 1
      %s29 = ssub.s32 %s23, 2
      %s36 = sadd.s32 1, %s31
      %p37 = scmp.ge.s32.totalorder %s36, 1
      %s38 = scalar_select %p37, 0, %s36
      %s39 = sadd.s32 1, %s30
      %s40 = scalar_select %p37, %s39, %s30
      %p41 = scmp.ge.s32.totalorder %s40, 2
      %s42 = scalar_select %p41, 0, %s40
      %s43 = ssub.s32 %s30, %s42
      %s44 = ssub.s32 %s31, %s38
      %s45 = sor.u32 %s43, %s44
      %p46 = scmp.eq.s32.totalorder %s45, 0
      %s48 = sadd.s32 %s47, 1
      %s49 = scalar_select %p46, %s47, %s48
      %p52 = pneg %p46
      %p53 = scmp.eq.s32.totalorder %s23, 1
      %p54 = por %p52, %p53
      %p55 = scmp.ne.s32.totalorder %s47, %s50
      %p56 = scmp.eq.s32.totalorder %s23, 0
      %p57 = por %p55, %p56
      %p58 = scmp.ne.s32.totalorder %s47, %s50
      %p59 = scmp.eq.s32.totalorder %s28, 1
      %p60 = por %p58, %p59
      %p61 = scmp.ne.s32.totalorder %s50, %s51
      %p62 = scmp.eq.s32.totalorder %s28, 0
      %p63 = por %p61, %p62
      %p64 = scmp.ne.s32.totalorder %s50, %s51
      %p65 = scmp.eq.s32.totalorder %s29, 1
      %p66 = por %p64, %p65
      %p68 = scmp.ne.s32.totalorder %s51, %s67
      %p69 = scmp.eq.s32.totalorder %s29, 0
      %p70 = por %p68, %p69
      %s72 = sadd.s32 %s71, 1
      %p75 = scmp.eq.s32.totalorder %s23, 1
      %p76 = scmp.ne.s32.totalorder %s71, %s73
      %p77 = scmp.eq.s32.totalorder %s23, 0
      %p78 = por %p76, %p77
      %p79 = scmp.ne.s32.totalorder %s71, %s73
      %p80 = scmp.eq.s32.totalorder %s28, 1
      %p81 = por %p79, %p80
      %p82 = scmp.ne.s32.totalorder %s73, %s74
      %p83 = scmp.eq.s32.totalorder %s28, 0
      %p84 = por %p82, %p83
      %p85 = scmp.ne.s32.totalorder %s73, %s74
      %p86 = scmp.eq.s32.totalorder %s29, 1
      %p87 = por %p85, %p86
      %p89 = scmp.ne.s32.totalorder %s74, %s88
      %p90 = scmp.eq.s32.totalorder %s29, 0
      %p91 = por %p89, %p90
      %s93 = sadd.s32 %s92, 1
      %p96 = scmp.eq.s32.totalorder %s23, 1
      %p97 = scmp.ne.s32.totalorder %s92, %s94
      %p98 = scmp.eq.s32.totalorder %s23, 0
      %p99 = por %p97, %p98
      %p100 = scmp.ne.s32.totalorder %s92, %s94
      %p101 = scmp.eq.s32.totalorder %s28, 1
      %p102 = por %p100, %p101
      %p103 = scmp.ne.s32.totalorder %s94, %s95
      %p104 = scmp.eq.s32.totalorder %s28, 0
      %p105 = por %p103, %p104
      %p106 = scmp.ne.s32.totalorder %s94, %s95
      %p107 = scmp.eq.s32.totalorder %s29, 1
      %p108 = por %p106, %p107
      %p110 = scmp.ne.s32.totalorder %s95, %s109
      %p111 = scmp.eq.s32.totalorder %s29, 0
      %p112 = por %p110, %p111
      %s114 = sadd.s32 %s113, 1
      %p117 = scmp.eq.s32.totalorder %s23, 1
      %p118 = scmp.ne.s32.totalorder %s113, %s115
      %p119 = scmp.eq.s32.totalorder %s23, 0
      %p120 = por %p118, %p119
      %p121 = scmp.ne.s32.totalorder %s113, %s115
      %p122 = scmp.eq.s32.totalorder %s28, 1
      %p123 = por %p121, %p122
      %p124 = scmp.ne.s32.totalorder %s115, %s116
      %p125 = scmp.eq.s32.totalorder %s28, 0
      %p126 = por %p124, %p125
      %p127 = scmp.ne.s32.totalorder %s115, %s116
      %p128 = scmp.eq.s32.totalorder %s29, 1
      %p129 = por %p127, %p128
      %p131 = scmp.ne.s32.totalorder %s116, %s130
      %p132 = scmp.eq.s32.totalorder %s29, 0
      %p133 = por %p131, %p132
      %s135 = sadd.s32 %s134, 1
      %p138 = scmp.eq.s32.totalorder %s23, 1
      %p139 = scmp.ne.s32.totalorder %s134, %s136
      %p140 = scmp.eq.s32.totalorder %s23, 0
      %p141 = por %p139, %p140
      %p142 = scmp.ne.s32.totalorder %s134, %s136
      %p143 = scmp.eq.s32.totalorder %s28, 1
      %p144 = por %p142, %p143
      %p145 = scmp.ne.s32.totalorder %s136, %s137
      %p146 = scmp.eq.s32.totalorder %s28, 0
      %p147 = por %p145, %p146
      %p148 = scmp.ne.s32.totalorder %s136, %s137
      %p149 = scmp.eq.s32.totalorder %s29, 1
      %p150 = por %p148, %p149
      %p152 = scmp.ne.s32.totalorder %s137, %s151
      %p153 = scmp.eq.s32.totalorder %s29, 0
      %p154 = por %p152, %p153
      %s155 = ssub.s32 %s30, %s42
      %s156 = ssub.s32 %s31, %s38
      %s157 = sor.u32 %s155, %s156
      %p158 = scmp.eq.s32.totalorder %s157, 0
      %s160 = sadd.s32 %s159, 1
      %s161 = scalar_select %p158, %s159, %s160
      %p164 = pneg %p158
      %p165 = scmp.eq.s32.totalorder %s23, 1
      %p166 = por %p164, %p165
      %p167 = scmp.ne.s32.totalorder %s159, %s162
      %p168 = scmp.eq.s32.totalorder %s23, 0
      %p169 = por %p167, %p168
      %p170 = scmp.ne.s32.totalorder %s159, %s162
      %p171 = scmp.eq.s32.totalorder %s28, 1
      %p172 = por %p170, %p171
      %p173 = scmp.ne.s32.totalorder %s162, %s163
      %p174 = scmp.eq.s32.totalorder %s28, 0
      %p175 = por %p173, %p174
      %p176 = scmp.ne.s32.totalorder %s162, %s163
      %p177 = scmp.eq.s32.totalorder %s29, 1
      %p178 = por %p176, %p177
      %p180 = scmp.ne.s32.totalorder %s163, %s179
      %p181 = scmp.eq.s32.totalorder %s29, 0
      %p182 = por %p180, %p181
      %s183 = ssub.s32 %s30, %s42
      %s184 = ssub.s32 %s31, %s38
      %s185 = sor.u32 %s183, %s184
      %p186 = scmp.eq.s32.totalorder %s185, 0
      %s188 = sadd.s32 %s187, 1
      %s189 = scalar_select %p186, %s187, %s188
      %p192 = pneg %p186
      %p193 = scmp.eq.s32.totalorder %s23, 1
      %p194 = por %p192, %p193
      %p195 = scmp.ne.s32.totalorder %s187, %s190
      %p196 = scmp.eq.s32.totalorder %s23, 0
      %p197 = por %p195, %p196
      %p198 = scmp.ne.s32.totalorder %s187, %s190
      %p199 = scmp.eq.s32.totalorder %s28, 1
      %p200 = por %p198, %p199
      %p201 = scmp.ne.s32.totalorder %s190, %s191
      %p202 = scmp.eq.s32.totalorder %s28, 0
      %p203 = por %p201, %p202
      %p204 = scmp.ne.s32.totalorder %s190, %s191
      %p205 = scmp.eq.s32.totalorder %s29, 1
      %p206 = por %p204, %p205
      %p208 = scmp.ne.s32.totalorder %s191, %s207
      %p209 = scmp.eq.s32.totalorder %s29, 0
      %p210 = por %p208, %p209
      %p211 = scmp.le.s32.totalorder 1, %s23
      %p212 = scmp.lt.s32.totalorder %s23, 3
      %p213 = pnand %p211, %p212
      %p214 = pneg %p213
      // Predicated region
      $region9: #{tpu_custom_call.1} parent=5 // pred_check
        _
      $region10: #{tpu_custom_call.1} parent=5 // pred_check_branch
        %216 = sbr.rel (%p213) target = $region12
      $region11: #{tpu_custom_call.1} parent=5 // pred_region
        %s217 = ssub.s32 %s23, 1
        // Predicated region
        $region13: #{tpu_custom_call.1} parent=11 // pred_check
          %p218 = pneg %p84
        $region14: #{tpu_custom_call.1} parent=11 // pred_check_branch
          %220 = sbr.rel (%p218) target = $region16
        $region15: #{tpu_custom_call.1} parent=11 // pred_region
          _
        $region16: #{tpu_custom_call.1} parent=11 // pred_fallthru
          _
        // Predicated region
        $region17: #{tpu_custom_call.1} parent=11 // pred_check
          %p221 = pneg %p105
        $region18: #{tpu_custom_call.1} parent=11 // pred_check_branch
          %223 = sbr.rel (%p221) target = $region20
        $region19: #{tpu_custom_call.1} parent=11 // pred_region
          _
        $region20: #{tpu_custom_call.1} parent=11 // pred_fallthru
          _
        // Predicated region
        $region21: #{tpu_custom_call.1} parent=11 // pred_check
          %p224 = pneg %p126
        $region22: #{tpu_custom_call.1} parent=11 // pred_check_branch
          %226 = sbr.rel (%p224) target = $region24
        $region23: #{tpu_custom_call.1} parent=11 // pred_region
          %s228 = ssub.s32 256, 256
          %229 = vsyncadd [#allocation6], %s228
          %s230 = sshll.u32 [#allocation5], 4
          %s231 = int_to_ptr.vmem [resolvable:$true] %s230
          %236 = dma.hbm_to_vmem [thread:$0]  %s3, 256, %s231, [#allocation6], 64, 64, 4
        $region24: #{tpu_custom_call.1} parent=11 // pred_fallthru
          _
        // Predicated region
        $region25: #{tpu_custom_call.1} parent=11 // pred_check
          %p237 = pneg %p147
        $region26: #{tpu_custom_call.1} parent=11 // pred_check_branch
          %239 = sbr.rel (%p237) target = $region28
        $region27: #{tpu_custom_call.1} parent=11 // pred_region
          _
        $region28: #{tpu_custom_call.1} parent=11 // pred_fallthru
          _
      $region12: #{tpu_custom_call.1} parent=5 // pred_fallthru
        _
      %p240 = scmp.lt.s32.totalorder %s23, 2
      // Predicated region
      $region29: #{tpu_custom_call.1} parent=5 // pred_check
        %p241 = pneg %p240
      $region30: #{tpu_custom_call.1} parent=5 // pred_check_branch
        %243 = sbr.rel (%p241) target = $region32
      $region31: #{tpu_custom_call.1} parent=5 // pred_region
        // Predicated region
        $region33: #{tpu_custom_call.1} parent=31 // pred_check
          %p244 = pneg %p57
        $region34: #{tpu_custom_call.1} parent=31 // pred_check_branch
          %246 = sbr.rel (%p244) target = $region36
        $region35: #{tpu_custom_call.1} parent=31 // pred_region
          %s247 = sand.u32 %s47, 1
          %s248 = scalar_lea.sflag [#allocation3], %s247
          %s249 = sand.u32 %s47, 1
          %s250 = smul.addr %s249, 8
          %s251 = scalar_lea.vmem [#allocation2], %s250
          %s253 = ssub.s32 128, 128
          %254 = vsyncadd %s248, %s253
          %s255 = sadd.s32 %s31, %s30
          %s256 = smul.addr %s255, 128
          %s257 = scalar_lea.hbm %s0, %s256
          %s259 = sshll.u32 %s251, 4
          %s260 = int_to_ptr.vmem [resolvable:$true] %s259
          %262 = dma.hbm_to_vmem [thread:$0]  %s257, 128, %s260, %s248
        $region36: #{tpu_custom_call.1} parent=31 // pred_fallthru
          _
      $region32: #{tpu_custom_call.1} parent=5 // pred_fallthru
        _
      %p263 = scmp.le.s32.totalorder 1, %s23
      %p264 = scmp.lt.s32.totalorder %s23, 3
      %p265 = pnand %p263, %p264
      %p266 = pneg %p265
      // Predicated region
      $region37: #{tpu_custom_call.1} parent=5 // pred_check
        _
      $region38: #{tpu_custom_call.1} parent=5 // pred_check_branch
        %268 = sbr.rel (%p265) target = $region40
      $region39: #{tpu_custom_call.1} parent=5 // pred_region
        %s269 = ssub.s32 %s23, 1
        %s270 = sand.u32 %s50, 1
        %s271 = scalar_lea.sflag [#allocation3], %s270
        %s272 = sand.u32 %s50, 1
        %s273 = smul.addr %s272, 8
        %s274 = scalar_lea.vmem [#allocation2], %s273
        // Predicated region
        $region41: #{tpu_custom_call.1} parent=39 // pred_check
          %p275 = pneg %p63
        $region42: #{tpu_custom_call.1} parent=39 // pred_check_branch
          %277 = sbr.rel (%p275) target = $region44
        $region43: #{tpu_custom_call.1} parent=39 // pred_region
          %278 = dma.done %s271, 128
        $region44: #{tpu_custom_call.1} parent=39 // pred_fallthru
          _
        // Predicated region
        $region45: #{tpu_custom_call.1} parent=39 // pred_check
          %p279 = pneg %p126
        $region46: #{tpu_custom_call.1} parent=39 // pred_check_branch
          %281 = sbr.rel (%p279) target = $region48
        $region47: #{tpu_custom_call.1} parent=39 // pred_region
          %282 = dma.done [#allocation6], 256
        $region48: #{tpu_custom_call.1} parent=39 // pred_fallthru
          _
        %s283 = sand.u32 %s50, 1
        %s284 = scalar_lea.sflag [#allocation3], %s283
        %s285 = sand.u32 %s50, 1
        %s286 = smul.addr %s285, 8
        %s287 = scalar_lea.vmem [#allocation2], %s286
        %p288 = pneg %p63
        %p289 = pneg %p60
        %p290 = pneg %p84
        %p291 = pneg %p81
        %p292 = pneg %p105
        %p293 = pneg %p102
        %p294 = pneg %p126
        %p295 = pneg %p123
        %p296 = pneg %p147
        %p297 = pneg %p144
        %p298 = pneg %p175
        %p299 = pneg %p172
        %s300 = sand.u32 %s162, 1
        %s301 = scalar_lea.sflag [#allocation4], %s300
        %s302 = sand.u32 %s162, 1
        %s303 = smul.addr %s302, 4
        %s304 = scalar_lea.vmem [#allocation7], %s303
        %p305 = pneg %p203
        %p306 = pneg %p200
        %s307 = sand.u32 %s190, 1
        %s308 = scalar_lea.sflag [#allocation9], %s307
        %s309 = sand.u32 %s190, 1
        %s310 = smul.addr %s309, 4
        %s311 = scalar_lea.vmem [#allocation8], %s310
        %v313 = vld [vmem:[%s274] sm:$0xff]
        %v314 = vld [vmem:[%s1] sm:$0x1]
        %v315 = vld [vmem:[%s2] sm:$0x1]
        %vm316 = vcmask 261120
        %v317 = vsel %vm316, %v313, 0.0
        %318 = vadd.xlane.f32.xlu0 %v317
        %v319 = vpop.xlane.xlu0 %318
        %v320 = vrcp.pop 32.0
        %v321 = vmul.f32 %v319, %v320
        %v322 = vmul.f32 %v313, %v313
        %v323 = vsel %vm316, %v322, 0.0
        %324 = vadd.xlane.f32.xlu0 %v323
        %v325 = vpop.xlane.xlu0 %324
        %v326 = vmul.f32 %v325, %v320
        %v327 = vmul.f32 %v321, %v321
        %v328 = vsub.f32 %v326, %v327
        %v329 = vsub.f32 %v313, %v321
        %v330 = vadd.f32 %v328, 1e-05
        %v331 = vrsqrt.pop %v330
        %v332 = vmul.f32 %v329, %v331
        %v334 = vlaneseq
        %v335 = vshrl.u32 %v334, 7
        %v336 = vsub.s32 0, %v335
        %v337 = vrot.slane %v314, %v336
        %v339 = vmul.f32 %v332, %v337
        %v341 = vlaneseq
        %v342 = vshrl.u32 %v341, 7
        %v343 = vsub.s32 0, %v342
        %v344 = vrot.slane %v315, %v343
        %v346 = vadd.f32 %v339, %v344
        %v347 = vpack.c.bf16 %v346, %v346
        %v348 = vld [vmem:[#allocation5] sm:$0xf]
        %v349 = vld [vmem:[#allocation5 + $0x4] sm:$0xf]
        %v350 = vld [vmem:[#allocation5 + $0x8] sm:$0xf]
        %v351 = vld [vmem:[#allocation5 + $0xc] sm:$0xf]
        %v352 = vld [vmem:[%s4] sm:$0x1]
        %v354 = vlaneseq
        %v355 = vshrl.u32 %v354, 7
        %v356 = vsub.s32 0, %v355
        %v357 = vrot.slane %v352, %v356
        %v363 = vunpack.c.l.b16 %v348
        %v364 = vunpack.c.l.b16 %v349
        %v365 = vunpack.c.l.b16 %v350
        %v366 = vunpack.c.l.b16 %v351
        %v367 = vpack.c.b16 %v364, %v363
        %v368 = vpack.c.b16 %v366, %v365
        %v372 = vsel %vm316, %v347, 0
        %374 = vmatprep.subr.bf16.mxu0 0
        %375 = vmatpush1.bf16.msra.mxu0 %v367
        %376 = vmatprep.subr.bf16.mxu0 0
        %377 = vmatpush1.bf16.msra.mxu0 %v368
        %378 = vmatprep.subr.bf16.mxu0 0
        %379 = vmatpush1.bf16.msra.mxu0 0
        %380 = vmatprep.subr.bf16.mxu0 0
        %381 = vmatpush1.bf16.msra.mxu0 0
        %382 = vmatprep.subr.bf16.mxu0 0
        %383 = vmatpush1.bf16.msra.mxu0 0
        %384 = vmatprep.subr.bf16.mxu0 0
        %385 = vmatpush1.bf16.msra.mxu0 0
        %386 = vmatprep.subr.bf16.mxu0 0
        %387 = vmatpush1.bf16.msra.mxu0 0
        %388 = vmatprep.subr.bf16.mxu0 0
        %389 = vmatpush1.bf16.msra.mxu0 0
        %390 = vmatprep.subr.bf16.mxu0 0
        %391 = vmatpush1.bf16.msra.mxu0 0
        %392 = vmatprep.subr.bf16.mxu0 0
        %393 = vmatpush1.bf16.msra.mxu0 0
        %394 = vmatprep.subr.bf16.mxu0 0
        %395 = vmatpush1.bf16.msra.mxu0 0
        %396 = vmatprep.subr.bf16.mxu0 0
        %397 = vmatpush1.bf16.msra.mxu0 0
        %398 = vmatprep.subr.bf16.mxu0 0
        %399 = vmatpush1.bf16.msra.mxu0 0
        %400 = vmatprep.subr.bf16.mxu0 0
        %401 = vmatpush1.bf16.msra.mxu0 0
        %402 = vmatprep.subr.bf16.mxu0 0
        %403 = vmatpush1.bf16.msra.mxu0 0
        %404 = vmatprep.subr.bf16.mxu0 0
        %405 = vmatpush1.bf16.msra.mxu0 0
        %406 = vmatprep.mubr.bf16.mxu0 0
        %407 = vmatmul.mubr.bf16.gmra.mrb[0].mxu0 %v372
        %v408 = vpop.f32.mrb[0].mxu0
        %v409 = vadd.f32 %v357, %v408
        %v410 = vpop.f32.mrb[0].mxu0
        %v411 = vpop.f32.mrb[0].mxu0
        %v412 = vpop.f32.mrb[0].mxu0
        %413 = vdwg.mxu0
        %v414 = vmul.f32 %v409, 0.35355338
        %v415 = vpack.c.bf16 %v414, %v414
        %vm416 = vcmask 257024
        %417 = vst.msk [vmem:[%s304] sm:$0xf] %vm416, %v415
        %v418 = vpack.c.bf16 %v409, %v409
        %v420 = vunpack.c.l.b16 %v418
        %v421 = vpack.c.b16 %v420, %v420
        %422 = vrot.lane.b32.xlu0 %v421, 96
        %v423 = vpop.permute.xlu0 %422
        %vm425 = vcmask 519168
        %426 = vst.msk [vmem:[%s311] sm:$0xf] %vm425, %v423
        %s427 = sand.u32 %s162, 1
        %s428 = scalar_lea.sflag [#allocation4], %s427
        %s429 = sand.u32 %s162, 1
        %s430 = smul.addr %s429, 4
        %s431 = scalar_lea.vmem [#allocation7], %s430
        %s432 = sand.u32 %s190, 1
        %s433 = scalar_lea.sflag [#allocation9], %s432
        %s434 = sand.u32 %s190, 1
        %s435 = smul.addr %s434, 4
        %s436 = scalar_lea.vmem [#allocation8], %s435
        // Predicated region
        $region49: #{tpu_custom_call.1} parent=39 // pred_check
          %p437 = pneg %p172
        $region50: #{tpu_custom_call.1} parent=39 // pred_check_branch
          %439 = sbr.rel (%p437) target = $region52
        $region51: #{tpu_custom_call.1} parent=39 // pred_region
          %s441 = ssub.s32 64, 64
          %442 = vsyncadd %s428, %s441
          %s443 = sadd.s32 %s33, %s32
          %s444 = smul.addr %s443, 64
          %s445 = scalar_lea.hbm %s5, %s444
          %s447 = sshll.u32 %s431, 4
          %s448 = int_to_ptr.vmem [resolvable:$true] %s447
          %450 = dma.vmem_to_hbm [thread:$0]  %s448, 64, %s445, %s428
        $region52: #{tpu_custom_call.1} parent=39 // pred_fallthru
          _
        // Predicated region
        $region53: #{tpu_custom_call.1} parent=39 // pred_check
          %p451 = pneg %p200
        $region54: #{tpu_custom_call.1} parent=39 // pred_check_branch
          %453 = sbr.rel (%p451) target = $region56
        $region55: #{tpu_custom_call.1} parent=39 // pred_region
          %s455 = ssub.s32 64, 64
          %456 = vsyncadd %s433, %s455
          %s457 = sadd.s32 %s33, %s32
          %s458 = smul.addr %s457, 64
          %s459 = scalar_lea.hbm %s6, %s458
          %s461 = sshll.u32 %s436, 4
          %s462 = int_to_ptr.vmem [resolvable:$true] %s461
          %464 = dma.vmem_to_hbm [thread:$0]  %s462, 64, %s459, %s433
        $region56: #{tpu_custom_call.1} parent=39 // pred_fallthru
          _
      $region40: #{tpu_custom_call.1} parent=5 // pred_fallthru
        _
      %p465 = scmp.le.s32.totalorder 2, %s23
      // Predicated region
      $region57: #{tpu_custom_call.1} parent=5 // pred_check
        %p466 = pneg %p465
      $region58: #{tpu_custom_call.1} parent=5 // pred_check_branch
        %468 = sbr.rel (%p466) target = $region60
      $region59: #{tpu_custom_call.1} parent=5 // pred_region
        %s469 = ssub.s32 %s23, 2
        // Predicated region
        $region61: #{tpu_custom_call.1} parent=59 // pred_check
          %p470 = pneg %p178
        $region62: #{tpu_custom_call.1} parent=59 // pred_check_branch
          %472 = sbr.rel (%p470) target = $region64
        $region63: #{tpu_custom_call.1} parent=59 // pred_region
          %s473 = sand.u32 %s163, 1
          %s474 = scalar_lea.sflag [#allocation4], %s473
          %s475 = sand.u32 %s163, 1
          %s476 = smul.addr %s475, 4
          %s477 = scalar_lea.vmem [#allocation7], %s476
          %478 = dma.done %s474, 64
        $region64: #{tpu_custom_call.1} parent=59 // pred_fallthru
          _
        // Predicated region
        $region65: #{tpu_custom_call.1} parent=59 // pred_check
          %p479 = pneg %p206
        $region66: #{tpu_custom_call.1} parent=59 // pred_check_branch
          %481 = sbr.rel (%p479) target = $region68
        $region67: #{tpu_custom_call.1} parent=59 // pred_region
          %s482 = sand.u32 %s191, 1
          %s483 = scalar_lea.sflag [#allocation9], %s482
          %s484 = sand.u32 %s191, 1
          %s485 = smul.addr %s484, 4
          %s486 = scalar_lea.vmem [#allocation8], %s485
          %487 = dma.done %s483, 64
        $region68: #{tpu_custom_call.1} parent=59 // pred_fallthru
          _
      $region60: #{tpu_custom_call.1} parent=5 // pred_fallthru
        _
    $region6: #{tpu_custom_call.1} parent=1 // loop_footer
      %s27 = sadd.s32 1, %s23
    $region7: #{tpu_custom_call.1} parent=1 // loop_footer_branch
      %22 = sbr.rel target = $region3
    $region8: #{tpu_custom_call.1} parent=1 // loop_exit
      _
    %488 = vsyncpa [#allocation3], 1
    %s489 = scalar_lea.sflag [#allocation3], 1
    %490 = vsyncpa %s489, 1
    %491 = vsyncpa [#allocation6], 1
    %492 = vsyncpa [#allocation4], 1
    %s493 = scalar_lea.sflag [#allocation4], 1
    %494 = vsyncpa %s493, 1
    %495 = vsyncpa [#allocation9], 1
    %s496 = scalar_lea.sflag [#allocation9], 1
    %497 = vsyncpa %s496, 1

</llo_original>
